<compile_context>
chip_gen: v5e
topology: v5e:2x2
jax: 0.10.0
libtpu: 0.0.40
codegen_flags: <defaults>
</compile_context>

<pallas_src>
import jax
import jax.numpy as jnp
from jax.experimental import pallas as pl
from jax.experimental.pallas import tpu as pltpu

LATENT_DIM = 128
HIDDEN = 256


def _round_up(x: int, m: int) -> int:
    return (x + m - 1) // m * m


def _disc_z_kernel(z_ref, w1_ref, b1_ref, w2_ref, b2_ref, out_ref):
    # z_ref:  (TILE_B, 128) bf16     w1_ref: (128, 256) bf16
    # b1_ref: (1, 256) f32           w2_ref: (1, 256) f32 (w2 transposed)
    # b2_ref: (1, 1) f32 in SMEM     out_ref: (TILE_B, 1) f32

    # Linear(128 -> 256): bf16 MXU matmul, f32 accumulation.
    h = jnp.dot(z_ref[...], w1_ref[...], preferred_element_type=jnp.float32)
    h = h + b1_ref[...]

    # LeakyReLU(0.2) in f32 on the VPU.
    h = jnp.where(h > 0, h, 0.2 * h)

    # Linear(256 -> 1) as a VPU multiply + cross-lane reduce (avoids an N=1
    # MXU matmul and overlaps with the MXU work of the next grid step).
    logits = jnp.sum(h * w2_ref[...], axis=-1, keepdims=True) + b2_ref[0, 0]

    # Sigmoid: exp on the EUP, approximate reciprocal on the EUP (free slot).
    out_ref[...] = pl.reciprocal(1.0 + jnp.exp(-logits), approx=True).astype(
        out_ref.dtype
    )


def discriminator_z_forward(z, w1, b1, w2, b2, *, tile_b=1024):
    """z: (B, 128) f32, w1: (128, 256), b1: (1, 256), w2: (256, 1), b2: (1, 1)
    -> (B, 1) f32."""
    B = z.shape[0]

    # Pick a batch tile: multiple of 8 (ideally 128+), capped so (tile + h
    # intermediate + weights) x double-buffering stays far under the v7x
    # 32 MiB scoped-VMEM default.
    tb = max(8, min(tile_b, _round_up(B, 8)))
    padded_b = _round_up(B, tb)
    if padded_b != B:
        z = jnp.pad(z, ((0, padded_b - B), (0, 0)))

    # bf16 operands for the MXU matmul (accumulation stays f32 in-kernel).
    z_bf16 = z.astype(jnp.bfloat16)
    w1_bf16 = w1.astype(jnp.bfloat16)
    # Second-layer weights as a (1, 256) row for the VPU mul+reduce path.
    w2_row = w2.reshape(1, HIDDEN).astype(jnp.float32)
    b1_f32 = b1.reshape(1, HIDDEN).astype(jnp.float32)
    b2_f32 = b2.reshape(1, 1).astype(jnp.float32)

    out = pl.pallas_call(
        _disc_z_kernel,
        out_shape=jax.ShapeDtypeStruct((padded_b, 1), jnp.float32),
        grid=(padded_b // tb,),
        in_specs=[
            pl.BlockSpec((tb, LATENT_DIM), lambda i: (i, 0)),       # z tile streams
            pl.BlockSpec((LATENT_DIM, HIDDEN), lambda i: (0, 0)),   # w1 resident
            pl.BlockSpec((1, HIDDEN), lambda i: (0, 0)),            # b1 resident
            pl.BlockSpec((1, HIDDEN), lambda i: (0, 0)),            # w2 row resident
            pl.BlockSpec(memory_space=pltpu.MemorySpace.SMEM),      # b2 scalar
        ],
        out_specs=pl.BlockSpec((tb, 1), lambda i: (i, 0)),
        compiler_params=pltpu.CompilerParams(
            dimension_semantics=("parallel",),
        ),
    )(z_bf16, w1_bf16, b1_f32, w2_row, b2_f32)

    return out[:B]


def init_params(key):
    """Deterministic init mimicking nn.Linear default (uniform +/- 1/sqrt(fan_in))."""
    k1, k2, k3, k4 = jax.random.split(key, 4)
    lim1 = 1.0 / jnp.sqrt(jnp.float32(LATENT_DIM))
    lim2 = 1.0 / jnp.sqrt(jnp.float32(HIDDEN))
    w1 = jax.random.uniform(k1, (LATENT_DIM, HIDDEN), jnp.float32, -lim1, lim1)
    b1 = jax.random.uniform(k2, (1, HIDDEN), jnp.float32, -lim1, lim1)
    w2 = jax.random.uniform(k3, (HIDDEN, 1), jnp.float32, -lim2, lim2)
    b2 = jax.random.uniform(k4, (1, 1), jnp.float32, -lim2, lim2)
    return w1, b1, w2, b2


def _reference(z, w1, b1, w2, b2):
    h = z @ w1 + b1
    h = jnp.where(h > 0, h, 0.2 * h)
    return jax.nn.sigmoid(h @ w2 + b2)


if __name__ == "__main__":
    key = jax.random.PRNGKey(0)
    kz, kp = jax.random.split(key)
    w1, b1, w2, b2 = init_params(kp)

    # Small test batch (matches the module's forward signature).
    B = 8
    z = jax.random.normal(kz, (B, LATENT_DIM), jnp.float32)
    out = jax.block_until_ready(discriminator_z_forward(z, w1, b1, w2, b2))
    ref = _reference(z, w1, b1, w2, b2)
    assert out.shape == (B, 1), out.shape
    # bf16 matmul operands + approx reciprocal -> loosened tolerance vs f32 ref.
    assert jnp.allclose(out, ref, atol=2e-2, rtol=2e-2), "mismatch vs JAX reference (B=8)"

    # Exercise the tiled / padded / multi-step-grid path (B not a tile multiple).
    B2 = 300
    z2 = jax.random.normal(jax.random.PRNGKey(1), (B2, LATENT_DIM), jnp.float32)
    out2 = jax.block_until_ready(
        discriminator_z_forward(z2, w1, b1, w2, b2, tile_b=128)
    )
    ref2 = _reference(z2, w1, b1, w2, b2)
    assert out2.shape == (B2, 1), out2.shape
    assert jnp.allclose(out2, ref2, atol=2e-2, rtol=2e-2), "mismatch vs JAX reference (B=300)"

    print("KERNEL_OK")
</pallas_src>

<mosaic_0001>
module attributes {stable_mosaic.version = 11 : i64} {
  func.func @_disc_z_kernel(%arg0: i32, %arg1: memref<8x128xbf16, #tpu.memory_space<vmem>>, %arg2: memref<128x256xbf16, #tpu.memory_space<vmem>>, %arg3: memref<1x256xf32, #tpu.memory_space<vmem>>, %arg4: memref<1x256xf32, #tpu.memory_space<vmem>>, %arg5: memref<1x1xf32, #tpu.memory_space<smem>>, %arg6: memref<8x1xf32, #tpu.memory_space<vmem>>) attributes {dimension_semantics = [#tpu.dimension_semantics<parallel>], iteration_bounds = array<i64: 1>, scalar_prefetch = 0 : i64, scratch_operands = 0 : i64, tpu.core_type = #tpu.core_type<tc>, window_params = [{transform_indices = @transform_0, window_bounds = array<i64: 8, 128>}, {pipeline_mode = #tpu.pipeline_mode<synchronous>, transform_indices = @transform_1, window_bounds = array<i64: 128, 256>}, {pipeline_mode = #tpu.pipeline_mode<synchronous>, transform_indices = @transform_2, window_bounds = array<i64: 1, 256>}, {pipeline_mode = #tpu.pipeline_mode<synchronous>, transform_indices = @transform_3, window_bounds = array<i64: 1, 256>}, {transform_indices = @transform_4, window_bounds = array<i64: 1, 1>}, {transform_indices = @transform_5, window_bounds = array<i64: 8, 1>}]} {
    %c0 = arith.constant 0 : index
    %c0_0 = arith.constant 0 : index
    %0 = vector.load %arg1[%c0, %c0_0] : memref<8x128xbf16, #tpu.memory_space<vmem>>, vector<8x128xbf16>
    %c0_1 = arith.constant 0 : index
    %c0_2 = arith.constant 0 : index
    %1 = vector.load %arg2[%c0_1, %c0_2] : memref<128x256xbf16, #tpu.memory_space<vmem>>, vector<128x256xbf16>
    %cst = arith.constant dense<0.000000e+00> : vector<8x256xf32>
    %2 = tpu.matmul %0, %1, %cst {dimension_numbers = #tpu.dot_dimension_numbers<[1], [0], [0], [1], [0, 0, 1, 1], [], []>} : vector<8x128xbf16>, vector<128x256xbf16>, vector<8x256xf32> -> vector<8x256xf32>
    %c0_3 = arith.constant 0 : index
    %c0_4 = arith.constant 0 : index
    %3 = vector.load %arg3[%c0_3, %c0_4] : memref<1x256xf32, #tpu.memory_space<vmem>>, vector<1x256xf32>
    %4 = vector.broadcast %3 : vector<1x256xf32> to vector<8x256xf32>
    %5 = arith.addf %2, %4 : vector<8x256xf32>
    %cst_5 = arith.constant 0.000000e+00 : f32
    %6 = vector.broadcast %cst_5 : f32 to vector<8x256xf32>
    %7 = arith.cmpf ogt, %5, %6 : vector<8x256xf32>
    %cst_6 = arith.constant 2.000000e-01 : f32
    %8 = vector.broadcast %cst_6 : f32 to vector<8x256xf32>
    %9 = arith.mulf %8, %5 : vector<8x256xf32>
    %10 = arith.select %7, %5, %9 : vector<8x256xi1>, vector<8x256xf32>
    %c0_7 = arith.constant 0 : index
    %c0_8 = arith.constant 0 : index
    %11 = vector.load %arg4[%c0_7, %c0_8] : memref<1x256xf32, #tpu.memory_space<vmem>>, vector<1x256xf32>
    %12 = vector.broadcast %11 : vector<1x256xf32> to vector<8x256xf32>
    %13 = arith.mulf %10, %12 : vector<8x256xf32>
    %cst_9 = arith.constant dense<0.000000e+00> : vector<8xf32>
    %14 = vector.multi_reduction <add>, %13, %cst_9 [1] : vector<8x256xf32> to vector<8xf32>
    %15 = vector.shape_cast %14 : vector<8xf32> to vector<8x1xf32>
    %c0_10 = arith.constant 0 : index
    %c0_11 = arith.constant 0 : index
    %16 = memref.load %arg5[%c0_10, %c0_11] : memref<1x1xf32, #tpu.memory_space<smem>>
    %17 = vector.broadcast %16 : f32 to vector<8x1xf32>
    %18 = arith.addf %15, %17 : vector<8x1xf32>
    %cst_12 = arith.constant 0.000000e+00 : f32
    %19 = vector.broadcast %cst_12 : f32 to vector<8x1xf32>
    %20 = arith.subf %19, %18 : vector<8x1xf32>
    %21 = math.exp %20 : vector<8x1xf32>
    %cst_13 = arith.constant 1.000000e+00 : f32
    %22 = vector.broadcast %cst_13 : f32 to vector<8x1xf32>
    %23 = arith.addf %22, %21 : vector<8x1xf32>
    %24 = tpu.reciprocal %23 {approx = true} : vector<8x1xf32> -> vector<8x1xf32>
    %c0_14 = arith.constant 0 : index
    %c0_15 = arith.constant 0 : index
    %25 = vector.load %arg6[%c0_14, %c0_15] : memref<8x1xf32, #tpu.memory_space<vmem>>, vector<8x1xf32>
    tpu.vector_store %arg6[%c0_14, %c0_15], %24 {strides = array<i32>} : memref<8x1xf32, #tpu.memory_space<vmem>>, vector<8x1xf32>,
    return
  }
  func.func @transform_0(%arg0: i32) -> (i32, i32) {
    %c0_i32 = arith.constant 0 : i32
    %c0_i32_0 = arith.constant 0 : i32
    return %arg0, %c0_i32 : i32, i32
  }
  func.func @transform_1(%arg0: i32) -> (i32, i32) {
    %c0_i32 = arith.constant 0 : i32
    %c0_i32_0 = arith.constant 0 : i32
    %c0_i32_1 = arith.constant 0 : i32
    return %c0_i32, %c0_i32_0 : i32, i32
  }
  func.func @transform_2(%arg0: i32) -> (i32, i32) {
    %c0_i32 = arith.constant 0 : i32
    %c0_i32_0 = arith.constant 0 : i32
    %c0_i32_1 = arith.constant 0 : i32
    return %c0_i32, %c0_i32_0 : i32, i32
  }
  func.func @transform_3(%arg0: i32) -> (i32, i32) {
    %c0_i32 = arith.constant 0 : i32
    %c0_i32_0 = arith.constant 0 : i32
    %c0_i32_1 = arith.constant 0 : i32
    return %c0_i32, %c0_i32_0 : i32, i32
  }
  func.func @transform_4(%arg0: i32) -> (i32, i32) {
    %c0_i32 = arith.constant 0 : i32
    %c0_i32_0 = arith.constant 0 : i32
    %c0_i32_1 = arith.constant 0 : i32
    return %c0_i32, %c0_i32_0 : i32, i32
  }
  func.func @transform_5(%arg0: i32) -> (i32, i32) {
    %c0_i32 = arith.constant 0 : i32
    %c0_i32_0 = arith.constant 0 : i32
    return %arg0, %c0_i32 : i32, i32
  }
}

</mosaic_0001>

<llo_original>
// kernel: tpu_custom_call.1
$region0: #{tpu_custom_call.1}
  #allocation0 [shape = 'u32[]', space=smem, size = 0x4, offset = 0x4, fixed_abs, tag = 'smem constant byte address 0x4 - core index']
  #allocation1 [shape = 'u32[72,128]{1,0:T(1,128)}', space=vmem, size = 0x9000, scoped, tag = 'internal scratch']
  #allocation2 [shape = 'f32[1,1]{1,0:T(1,128)S(6)}', space=smem, size = 0x200, scoped, tag = 'scoped memory for tpu_custom_call.1']
  %s0 = inlined_call_operand.hbm [shape: bf16[8,128], index: 0, kind: input, shape index: {}]
  %s1 = inlined_call_operand.hbm [shape: bf16[128,256], index: 1, kind: input, shape index: {}]
  %s2 = inlined_call_operand.vmem [shape: f32[1,256], index: 2, kind: input, shape index: {}]
  %s3 = inlined_call_operand.vmem [shape: f32[1,256], index: 3, kind: input, shape index: {}]
  %s4 = inlined_call_operand.<no memory space> [shape: f32[1,1], index: 4, kind: input, shape index: {}]
  %s5 = inlined_call_operand.vmem [shape: f32[8,1], index: 5, kind: output, shape index: {}]
  %s6 = sld [smem:[#allocation0]]
  $region38: #{tpu_custom_call.1} parent=0
    _
  %s8 = ssub.s32 1, %s6
  %s9 = scalar_select 0, %s8, %s6
  %10 = sst [smem:[#allocation2]] %s4
  $region1: #{tpu_custom_call.1} parent=0
    #allocation3 [shape = 'u8[2048]{0}', space=vmem, size = 0x800, scoped, tag = 'input window, operand 0, single buffered']
    #allocation4 [shape = 's32[1]{0}', space=sflag, size = 0x4, scoped, tag = 'scoped memory for tpu_custom_call.1']
    #allocation5 [shape = 'u8[65536]{0}', space=vmem, size = 0x10000, scoped, tag = 'input window, operand 1, single buffered']
    #allocation6 [shape = 's32[1]{0}', space=sflag, size = 0x4, scoped, tag = 'scoped memory for tpu_custom_call.1']
    %11 = vsyncpa [#allocation4], 0
    %12 = vsyncpa [#allocation6], 0
    // Predicated region
    $region2: #{tpu_custom_call.1} parent=1 // pred_check
      _
    $region3: #{tpu_custom_call.1} parent=1 // pred_check_branch
      %14 = sbr.rel (0) target = $region5
    $region4: #{tpu_custom_call.1} parent=1 // pred_region
      %16 = vsyncadd [#allocation4], 0
      %s18 = sshll.u32 %s0, 4
      %s19 = int_to_ptr.hbm [resolvable:$true] %s18
      %s20 = sshll.u32 [#allocation3], 4
      %s21 = int_to_ptr.vmem [resolvable:$true] %s20
      %23 = dma.hbm_to_vmem [thread:$0]  %s19, 64, %s21, [#allocation4]
    $region5: #{tpu_custom_call.1} parent=1 // pred_fallthru
      _
    // Predicated region
    $region6: #{tpu_custom_call.1} parent=1 // pred_check
      _
    $region7: #{tpu_custom_call.1} parent=1 // pred_check_branch
      %25 = sbr.rel (0) target = $region9
    $region8: #{tpu_custom_call.1} parent=1 // pred_region
      %27 = vsyncadd [#allocation6], 0
      %s28 = sshll.u32 %s1, 4
      %s29 = int_to_ptr.hbm [resolvable:$true] %s28
      %s30 = sshll.u32 [#allocation5], 4
      %s31 = int_to_ptr.vmem [resolvable:$true] %s30
      %36 = dma.hbm_to_vmem [thread:$0]  %s29, 2048, %s31, [#allocation6], 128, 128, 8
    $region9: #{tpu_custom_call.1} parent=1 // pred_fallthru
      _
    // Predicated region
    $region10: #{tpu_custom_call.1} parent=1 // pred_check
      _
    $region11: #{tpu_custom_call.1} parent=1 // pred_check_branch
      %38 = sbr.rel (0) target = $region13
    $region12: #{tpu_custom_call.1} parent=1 // pred_region
      _
    $region13: #{tpu_custom_call.1} parent=1 // pred_fallthru
      _
    // Predicated region
    $region14: #{tpu_custom_call.1} parent=1 // pred_check
      _
    $region15: #{tpu_custom_call.1} parent=1 // pred_check_branch
      %40 = sbr.rel (0) target = $region17
    $region16: #{tpu_custom_call.1} parent=1 // pred_region
      _
    $region17: #{tpu_custom_call.1} parent=1 // pred_fallthru
      _
    // Predicated region
    $region18: #{tpu_custom_call.1} parent=1 // pred_check
      _
    $region19: #{tpu_custom_call.1} parent=1 // pred_check_branch
      %42 = sbr.rel (0) target = $region21
    $region20: #{tpu_custom_call.1} parent=1 // pred_region
      _
    $region21: #{tpu_custom_call.1} parent=1 // pred_fallthru
      _
    // Predicated region
    $region22: #{tpu_custom_call.1} parent=1 // pred_check
      _
    $region23: #{tpu_custom_call.1} parent=1 // pred_check_branch
      %44 = sbr.rel (0) target = $region25
    $region24: #{tpu_custom_call.1} parent=1 // pred_region
      %46 = dma.done [#allocation4], 64
    $region25: #{tpu_custom_call.1} parent=1 // pred_fallthru
      _
    // Predicated region
    $region26: #{tpu_custom_call.1} parent=1 // pred_check
      _
    $region27: #{tpu_custom_call.1} parent=1 // pred_check_branch
      %48 = sbr.rel (0) target = $region29
    $region28: #{tpu_custom_call.1} parent=1 // pred_region
      %50 = dma.done [#allocation6], 2048
    $region29: #{tpu_custom_call.1} parent=1 // pred_fallthru
      _
    %v51 = vld [vmem:[#allocation3] sm:$0xf]
    %v52 = vld [vmem:[#allocation5] sm:$0xff]
    %v53 = vld [vmem:[#allocation5 + $0x8] sm:$0xff]
    %v54 = vld [vmem:[#allocation5 + $0x10] sm:$0xff]
    %v55 = vld [vmem:[#allocation5 + $0x18] sm:$0xff]
    %v56 = vld [vmem:[#allocation5 + $0x20] sm:$0xff]
    %v57 = vld [vmem:[#allocation5 + $0x28] sm:$0xff]
    %v58 = vld [vmem:[#allocation5 + $0x30] sm:$0xff]
    %v59 = vld [vmem:[#allocation5 + $0x38] sm:$0xff]
    %v60 = vld [vmem:[#allocation5 + $0x40] sm:$0xff]
    %v61 = vld [vmem:[#allocation5 + $0x48] sm:$0xff]
    %v62 = vld [vmem:[#allocation5 + $0x50] sm:$0xff]
    %v63 = vld [vmem:[#allocation5 + $0x58] sm:$0xff]
    %v64 = vld [vmem:[#allocation5 + $0x60] sm:$0xff]
    %v65 = vld [vmem:[#allocation5 + $0x68] sm:$0xff]
    %v66 = vld [vmem:[#allocation5 + $0x70] sm:$0xff]
    %v67 = vld [vmem:[#allocation5 + $0x78] sm:$0xff]
    %v68 = vld [vmem:[%s2] sm:$0x3]
    %v70 = vperm.slane %v68, 0
    %v71 = vperm.slane %v68, 1
    %v90 = vunpack.c.l.b16 %v52
    %v91 = vunpack.c.h.b16 %v52
    %v92 = vunpack.c.l.b16 %v53
    %v93 = vunpack.c.h.b16 %v53
    %v94 = vunpack.c.l.b16 %v54
    %v95 = vunpack.c.h.b16 %v54
    %v96 = vunpack.c.l.b16 %v55
    %v97 = vunpack.c.h.b16 %v55
    %v98 = vunpack.c.l.b16 %v56
    %v99 = vunpack.c.h.b16 %v56
    %v100 = vunpack.c.l.b16 %v57
    %v101 = vunpack.c.h.b16 %v57
    %v102 = vunpack.c.l.b16 %v58
    %v103 = vunpack.c.h.b16 %v58
    %v104 = vunpack.c.l.b16 %v59
    %v105 = vunpack.c.h.b16 %v59
    %v106 = vunpack.c.l.b16 %v60
    %v107 = vunpack.c.h.b16 %v60
    %v108 = vunpack.c.l.b16 %v61
    %v109 = vunpack.c.h.b16 %v61
    %v110 = vunpack.c.l.b16 %v62
    %v111 = vunpack.c.h.b16 %v62
    %v112 = vunpack.c.l.b16 %v63
    %v113 = vunpack.c.h.b16 %v63
    %v114 = vunpack.c.l.b16 %v64
    %v115 = vunpack.c.h.b16 %v64
    %v116 = vunpack.c.l.b16 %v65
    %v117 = vunpack.c.h.b16 %v65
    %v118 = vunpack.c.l.b16 %v66
    %v119 = vunpack.c.h.b16 %v66
    %v120 = vunpack.c.l.b16 %v67
    %v121 = vunpack.c.h.b16 %v67
    %v122 = vpack.c.b16 %v92, %v90
    %v123 = vpack.c.b16 %v93, %v91
    %v124 = vpack.c.b16 %v96, %v94
    %v125 = vpack.c.b16 %v97, %v95
    %v126 = vpack.c.b16 %v100, %v98
    %v127 = vpack.c.b16 %v101, %v99
    %v128 = vpack.c.b16 %v104, %v102
    %v129 = vpack.c.b16 %v105, %v103
    %v130 = vpack.c.b16 %v108, %v106
    %v131 = vpack.c.b16 %v109, %v107
    %v132 = vpack.c.b16 %v112, %v110
    %v133 = vpack.c.b16 %v113, %v111
    %v134 = vpack.c.b16 %v116, %v114
    %v135 = vpack.c.b16 %v117, %v115
    %v136 = vpack.c.b16 %v120, %v118
    %v137 = vpack.c.b16 %v121, %v119
    %154 = vmatpush.bf16.msra.mxu0 %v136
    %155 = vmatpush.bf16.msra.mxu0 %v134
    %156 = vmatpush.bf16.msra.mxu0 %v132
    %157 = vmatpush.bf16.msra.mxu0 %v130
    %158 = vmatpush.bf16.msra.mxu0 %v128
    %159 = vmatpush.bf16.msra.mxu0 %v126
    %160 = vmatpush.bf16.msra.mxu0 %v124
    %161 = vmatpush.bf16.msra.mxu0 %v122
    %162 = vmatmul.bf16.gmra.mxu0 %v51
    %v163 = vpop.f32.mrf.mxu0
    %v164 = vadd.f32 %v70, %v163
    %v165 = vpop.f32.mrf.mxu0
    %166 = vdwg.mxu0
    %167 = vmatpush.bf16.msra.mxu0 %v137
    %168 = vmatpush.bf16.msra.mxu0 %v135
    %169 = vmatpush.bf16.msra.mxu0 %v133
    %170 = vmatpush.bf16.msra.mxu0 %v131
    %171 = vmatpush.bf16.msra.mxu0 %v129
    %172 = vmatpush.bf16.msra.mxu0 %v127
    %173 = vmatpush.bf16.msra.mxu0 %v125
    %174 = vmatpush.bf16.msra.mxu0 %v123
    %175 = vmatmul.bf16.gmra.mxu0 %v51
    %v176 = vpop.f32.mrf.mxu0
    %v177 = vadd.f32 %v71, %v176
    %v178 = vpop.f32.mrf.mxu0
    %179 = vdwg.mxu0
    %vm180 = vcmp.gt.f32.partialorder %v164, 0.0
    %vm181 = vcmp.gt.f32.partialorder %v177, 0.0
    %v182 = vmul.f32 %v164, 0.2
    %v183 = vmul.f32 %v177, 0.2
    %v184 = vsel %vm180, %v164, %v182
    %v185 = vsel %vm181, %v177, %v183
    %v186 = vld [vmem:[%s3] sm:$0x3]
    %v188 = vperm.slane %v186, 0
    %v189 = vperm.slane %v186, 1
    %v192 = vmul.f32 %v184, %v188
    %v193 = vmul.f32 %v185, %v189
    %v194 = vadd.f32 %v192, %v193
    %195 = vadd.xlane.f32.xlu0 %v194
    %v196 = vpop.xlane.xlu0 %195
    %s197 = sld [smem:[#allocation2]]
    %v198 = vstv %s197
    %v199 = vadd.f32 %v196, %v198
    %v200 = vsub.f32 0.0, %v199
    %v201 = vmul.f32 %v200, 1.442695
    %v202 = vpow.pop %v201
    %v203 = vadd.f32 %v202, 1.0
    %v204 = vrcp.pop %v203
    %vm205 = vcmask 7168
    %206 = vst.msk [vmem:[%s5] sm:$0xff] %vm205, %v204
    // Predicated region
    $region30: #{tpu_custom_call.1} parent=1 // pred_check
      _
    $region31: #{tpu_custom_call.1} parent=1 // pred_check_branch
      %208 = sbr.rel (0) target = $region33
    $region32: #{tpu_custom_call.1} parent=1 // pred_region
      _
    $region33: #{tpu_custom_call.1} parent=1 // pred_fallthru
      _
    // Predicated region
    $region34: #{tpu_custom_call.1} parent=1 // pred_check
      _
    $region35: #{tpu_custom_call.1} parent=1 // pred_check_branch
      %210 = sbr.rel (0) target = $region37
    $region36: #{tpu_custom_call.1} parent=1 // pred_region
      _
    $region37: #{tpu_custom_call.1} parent=1 // pred_fallthru
      _
    %211 = vsyncpa [#allocation4], 1
    %212 = vsyncpa [#allocation6], 1

</llo_original>
